<compile_context>
chip_gen: v7x
topology: tpu7x:2x2x1
jax: 0.10.0
libtpu: 0.0.40
codegen_flags: <defaults>
</compile_context>

<pallas_src>
import functools

import jax
import jax.numpy as jnp
from jax.experimental import pallas as pl
from jax.experimental.pallas import tpu as pltpu


# --------------------------------------------------------------------------
# Kernel body
# --------------------------------------------------------------------------
def _ln_rows(v, gamma, beta, eps, seg):
    """LayerNorm over rows (or lane-folded row segments), f32 compute.

    seg is either None (reduce over the whole last axis) or a (W, W)
    block-diagonal segment-mean matrix (1/d within a segment, 0 elsewhere),
    in which case mean/E[x^2] come from one MXU matmul each and are already
    broadcast back to every lane of the segment.
    """
    v = v.astype(jnp.float32)
    if seg is None:
        mean = jnp.mean(v, axis=-1, keepdims=True)
        ex2 = jnp.mean(v * v, axis=-1, keepdims=True)
    else:
        mean = jnp.dot(v, seg, preferred_element_type=jnp.float32)
        ex2 = jnp.dot(v * v, seg, preferred_element_type=jnp.float32)
    var = jnp.maximum(ex2 - mean * mean, 0.0)
    inv = jax.lax.rsqrt(var + eps)
    return (v - mean) * inv * gamma + beta


def _prenorm2_kernel(x_ref, x2_ref, g_ref, b_ref, *rest, fn, eps, folded):
    """Refs: x, x2, gamma, beta, [seg], out(s).

    fn is None  -> two outputs (LN(x), LN(x2))  (general path).
    fn not None -> one output  fn(LN(x), LN(x2)) (fused path, fn elementwise).
    """
    if folded:
        seg = rest[0][...]
        outs = rest[1:]
    else:
        seg = None
        outs = rest

    gamma = g_ref[...].astype(jnp.float32)   # (1, W) broadcasts over rows
    beta = b_ref[...].astype(jnp.float32)

    a = _ln_rows(x_ref[...], gamma, beta, eps, seg)
    c = _ln_rows(x2_ref[...], gamma, beta, eps, seg)

    if fn is None:
        outs[0][...] = a.astype(outs[0].dtype)
        outs[1][...] = c.astype(outs[1].dtype)
    else:
        o_ref = outs[0]
        # Cast LN outputs to the working dtype before fn (matches the PyTorch
        # composition and keeps the elementwise tail narrow for bf16).
        o_ref[...] = fn(a.astype(o_ref.dtype), c.astype(o_ref.dtype)).astype(
            o_ref.dtype)


# --------------------------------------------------------------------------
# Tiling helpers
# --------------------------------------------------------------------------
_MIB = 1024 * 1024
_MAX_TILE_ROWS = 2048
_N_F32_TMP = 6          # live f32 full-width temporaries per grid step (est.)
_SPLIT_THRESHOLD = 2 * _MIB   # flattened-input size above which we force >=2 tiles


def _round_up(x, m):
    return ((x + m - 1) // m) * m


def _vmem_capacity_bytes():
    try:
        cap = int(getattr(pltpu.get_tpu_info(), "vmem_capacity_bytes"))
        if cap > 0:
            return cap
    except Exception:  # pragma: no cover - conservative fallback
        pass
    return 64 * _MIB   # v7x per-TensorCore physical VMEM (smallest generation)


def _pick_tile_rows(rows, w, itemsize, n_io):
    """Row tile (multiple of 8) sized so double-buffered IO tiles *plus* the
    f32 compute temporaries fit the VMEM budget; also guarantees >= 2 (even)
    grid steps for large inputs so v7x's two TensorCores both get work."""
    cap = _vmem_capacity_bytes()
    budget = min(40 * _MIB, (cap * 3) // 8)
    per_row = n_io * 2 * w * itemsize + _N_F32_TMP * w * 4
    tile = max(8, min(_MAX_TILE_ROWS, (max(8, budget // per_row) // 8) * 8))
    tile = min(tile, _round_up(rows, 8))

    # Megacore: never let one tile swallow a large row range.
    if rows * w * itemsize > _SPLIT_THRESHOLD:
        tile = min(tile, max(8, _round_up(pl.cdiv(rows, 2), 8)))

    # Balance the grid (avoid a nearly-empty last step) and prefer an even
    # number of steps when there is more than one.
    g = pl.cdiv(rows, tile)
    if g > 1 and g % 2 == 1:
        g += 1
    tile = max(8, _round_up(pl.cdiv(rows, g), 8))
    return tile


def _vmem_limit(tile, w, itemsize, n_io):
    cap = _vmem_capacity_bytes()
    io = n_io * 2 * tile * w * itemsize         # double-buffered IO tiles
    tmp = _N_F32_TMP * tile * w * 4             # f32 compute temporaries
    need = io + tmp + 2 * _MIB                  # + compiler scratch headroom
    return int(min(cap - 8 * _MIB, max(16 * _MIB, 2 * need)))


# --------------------------------------------------------------------------
# pallas_call wrapper
# --------------------------------------------------------------------------
def _prenorm2_call(x, x2, gamma, beta, *, fn, eps):
    """fn=None  -> (LN(x), LN(x2)) with shared gamma/beta (one pallas_call).
       fn given -> fn(LN(x), LN(x2)) fused into the same kernel (fn must be
                   elementwise / lane-local)."""
    assert x.shape == x2.shape, "x and x2 must have the same shape"
    orig_shape = x.shape
    d = orig_shape[-1]
    xf = x.reshape(-1, d)
    x2f = x2.reshape(-1, d)
    rows = xf.shape[0]
    itemsize = jnp.dtype(x.dtype).itemsize

    # ---- lane folding for narrow hidden dims -----------------------------
    fold = (d < 128) and (128 % d == 0)
    if fold:
        k = 128 // d
        pad = (-rows) % k
        if pad:
            xf = jnp.pad(xf, ((0, pad), (0, 0)))
            x2f = jnp.pad(x2f, ((0, pad), (0, 0)))
        frows = (rows + pad) // k
        w = k * d
        xf = xf.reshape(frows, w)
        x2f = x2f.reshape(frows, w)
        g2 = jnp.tile(gamma.reshape(1, d).astype(jnp.float32), (1, k))
        b2 = jnp.tile(beta.reshape(1, d).astype(jnp.float32), (1, k))
        seg_id = jnp.arange(w) // d
        seg = (seg_id[:, None] == seg_id[None, :]).astype(jnp.float32) / d
    else:
        frows, w = rows, d
        g2 = gamma.reshape(1, d).astype(jnp.float32)
        b2 = beta.reshape(1, d).astype(jnp.float32)
        seg = None

    n_out = 1 if fn is not None else 2
    n_io = 2 + n_out
    tile = _pick_tile_rows(frows, w, itemsize, n_io)
    grid = (pl.cdiv(frows, tile),)

    io_spec = pl.BlockSpec((tile, w), lambda i: (i, 0))
    vec_spec = pl.BlockSpec((1, w), lambda i: (0, 0))
    in_specs = [io_spec, io_spec, vec_spec, vec_spec]
    args = [xf, x2f, g2, b2]
    if fold:
        in_specs.append(pl.BlockSpec((w, w), lambda i: (0, 0)))
        args.append(seg)

    if fn is None:
        out_shapes = (jax.ShapeDtypeStruct((frows, w), x.dtype),
                      jax.ShapeDtypeStruct((frows, w), x2.dtype))
        out_specs = (io_spec, io_spec)
    else:
        out_shapes = jax.ShapeDtypeStruct((frows, w), x.dtype)
        out_specs = io_spec

    kernel = functools.partial(_prenorm2_kernel, fn=fn, eps=eps, folded=fold)
    out = pl.pallas_call(
        kernel,
        out_shape=out_shapes,
        grid_spec=pltpu.PrefetchScalarGridSpec(
            num_scalar_prefetch=0,
            grid=grid,
            in_specs=in_specs,
            out_specs=out_specs,
        ),
        compiler_params=pltpu.CompilerParams(
            dimension_semantics=("parallel",),
            vmem_limit_bytes=_vmem_limit(tile, w, itemsize, n_io),
        ),
    )(*args)

    def _unfold(y):
        if fold:
            y = y.reshape(-1, d)[:rows]
        return y.reshape(orig_shape)

    if fn is None:
        return _unfold(out[0]), _unfold(out[1])
    return _unfold(out)


def prenorm2_fused(x, x2, gamma, beta, fn, *, eps=1e-5):
    """fn(LN(x), LN(x2)) fully fused; fn must be elementwise / lane-local."""
    return _prenorm2_call(x, x2, gamma, beta, fn=fn, eps=eps)


def layernorm_pair(x, x2, gamma, beta, *, eps=1e-5):
    """(LN(x), LN(x2)) with shared gamma/beta in one pallas_call."""
    return _prenorm2_call(x, x2, gamma, beta, fn=None, eps=eps)


# --------------------------------------------------------------------------
# Module
# --------------------------------------------------------------------------
class PreNorm2:
    """JAX/Pallas equivalent of the PyTorch PreNorm2 module.

    fuse_fn=True : `fn` is elementwise / lane-local and runs inside the fused
                   kernel (2 HBM reads + 1 write — fastest path).
    fuse_fn=False: `fn` may be ANY JAX callable; it is applied outside a single
                   two-output LayerNorm kernel.
    """

    def __init__(self, dim, fn, *, eps: float = 1e-5, fuse_fn: bool = False):
        self.dim = dim
        self.fn = fn
        self.eps = eps
        self.fuse_fn = fuse_fn
        # nn.LayerNorm(dim) default init: weight = ones, bias = zeros.
        self.gamma = jnp.ones((dim,), dtype=jnp.float32)
        self.beta = jnp.zeros((dim,), dtype=jnp.float32)

    def __call__(self, x, x2, **kwargs):
        if self.fuse_fn:
            fn = self.fn
            if kwargs:
                fn = lambda a, b: self.fn(a, b, **kwargs)  # noqa: E731
            return prenorm2_fused(x, x2, self.gamma, self.beta, fn, eps=self.eps)
        nx, nx2 = layernorm_pair(x, x2, self.gamma, self.beta, eps=self.eps)
        return self.fn(nx, nx2, **kwargs)


# --------------------------------------------------------------------------
# Demo / correctness check
# --------------------------------------------------------------------------
if __name__ == "__main__":
    key = jax.random.PRNGKey(0)
    k1, k2, k3, k4 = jax.random.split(key, 4)

    def ref_ln(v, eps=1e-5):
        m = jnp.mean(v, axis=-1, keepdims=True)
        va = jnp.mean((v - m) ** 2, axis=-1, keepdims=True)
        return (v - m) * jax.lax.rsqrt(va + eps)

    # ---- main case: B=2, N=8, D=32 (lane-folded path, k=4) ---------------
    B, N, D = 2, 8, 32
    x = jax.random.normal(k1, (B, N, D), dtype=jnp.float32)
    x2 = jax.random.normal(k2, (B, N, D), dtype=jnp.float32)
    ref = ref_ln(x) + ref_ln(x2)

    pn_fused = PreNorm2(D, fn=lambda a, b: a + b, fuse_fn=True)
    out_fused = jax.block_until_ready(pn_fused(x, x2))
    assert out_fused.shape == (B, N, D)
    assert jnp.allclose(out_fused, ref, atol=2e-5, rtol=2e-5), "fused mismatch"

    pn_general = PreNorm2(D, fn=lambda a, b: a + b, fuse_fn=False)
    out_general = jax.block_until_ready(pn_general(x, x2))
    assert jnp.allclose(out_general, ref, atol=2e-5, rtol=2e-5), "general mismatch"

    # ---- secondary case: D=128 exercises the plain (non-folded) path -----
    D2 = 128
    y = jax.random.normal(k3, (B, N, D2), dtype=jnp.float32)
    y2 = jax.random.normal(k4, (B, N, D2), dtype=jnp.float32)
    ref2 = ref_ln(y) + ref_ln(y2)
    pn2 = PreNorm2(D2, fn=lambda a, b: a + b, fuse_fn=True)
    out2 = jax.block_until_ready(pn2(y, y2))
    assert jnp.allclose(out2, ref2, atol=2e-5, rtol=2e-5), "plain-path mismatch"

    print("KERNEL_OK")
</pallas_src>

<mosaic_0001>
module attributes {stable_mosaic.version = 11 : i64} {
  func.func @_prenorm2_kernel(%arg0: i32, %arg1: memref<8x128xf32, #tpu.memory_space<vmem>>, %arg2: memref<8x128xf32, #tpu.memory_space<vmem>>, %arg3: memref<1x128xf32, #tpu.memory_space<vmem>>, %arg4: memref<1x128xf32, #tpu.memory_space<vmem>>, %arg5: memref<128x128xf32, #tpu.memory_space<vmem>>, %arg6: memref<8x128xf32, #tpu.memory_space<vmem>>) attributes {dimension_semantics = [#tpu.dimension_semantics<parallel>], iteration_bounds = array<i64: 1>, scalar_prefetch = 0 : i64, scratch_operands = 0 : i64, tpu.core_type = #tpu.core_type<tc>, window_params = [{transform_indices = @transform_0, window_bounds = array<i64: 8, 128>}, {transform_indices = @transform_1, window_bounds = array<i64: 8, 128>}, {pipeline_mode = #tpu.pipeline_mode<synchronous>, transform_indices = @transform_2, window_bounds = array<i64: 1, 128>}, {pipeline_mode = #tpu.pipeline_mode<synchronous>, transform_indices = @transform_3, window_bounds = array<i64: 1, 128>}, {pipeline_mode = #tpu.pipeline_mode<synchronous>, transform_indices = @transform_4, window_bounds = array<i64: 128, 128>}, {transform_indices = @transform_5, window_bounds = array<i64: 8, 128>}]} {
    %c0 = arith.constant 0 : index
    %c0_0 = arith.constant 0 : index
    %0 = vector.load %arg5[%c0, %c0_0] : memref<128x128xf32, #tpu.memory_space<vmem>>, vector<128x128xf32>
    %c0_1 = arith.constant 0 : index
    %c0_2 = arith.constant 0 : index
    %1 = vector.load %arg3[%c0_1, %c0_2] : memref<1x128xf32, #tpu.memory_space<vmem>>, vector<1x128xf32>
    %c0_3 = arith.constant 0 : index
    %c0_4 = arith.constant 0 : index
    %2 = vector.load %arg4[%c0_3, %c0_4] : memref<1x128xf32, #tpu.memory_space<vmem>>, vector<1x128xf32>
    %c0_5 = arith.constant 0 : index
    %c0_6 = arith.constant 0 : index
    %3 = vector.load %arg1[%c0_5, %c0_6] : memref<8x128xf32, #tpu.memory_space<vmem>>, vector<8x128xf32>
    %cst = arith.constant dense<0.000000e+00> : vector<8x128xf32>
    %4 = tpu.matmul %3, %0, %cst {dimension_numbers = #tpu.dot_dimension_numbers<[1], [0], [0], [1], [0, 0, 1, 1], [], []>} : vector<8x128xf32>, vector<128x128xf32>, vector<8x128xf32> -> vector<8x128xf32>
    %5 = arith.mulf %3, %3 : vector<8x128xf32>
    %cst_7 = arith.constant dense<0.000000e+00> : vector<8x128xf32>
    %6 = tpu.matmul %5, %0, %cst_7 {dimension_numbers = #tpu.dot_dimension_numbers<[1], [0], [0], [1], [0, 0, 1, 1], [], []>} : vector<8x128xf32>, vector<128x128xf32>, vector<8x128xf32> -> vector<8x128xf32>
    %7 = arith.mulf %4, %4 : vector<8x128xf32>
    %8 = arith.subf %6, %7 : vector<8x128xf32>
    %cst_8 = arith.constant 0.000000e+00 : f32
    %9 = vector.broadcast %cst_8 : f32 to vector<8x128xf32>
    %10 = arith.maximumf %8, %9 : vector<8x128xf32>
    %cst_9 = arith.constant 9.99999974E-6 : f32
    %11 = vector.broadcast %cst_9 : f32 to vector<8x128xf32>
    %12 = arith.addf %10, %11 : vector<8x128xf32>
    %13 = math.rsqrt %12 : vector<8x128xf32>
    %14 = arith.subf %3, %4 : vector<8x128xf32>
    %15 = arith.mulf %14, %13 : vector<8x128xf32>
    %16 = vector.broadcast %1 : vector<1x128xf32> to vector<8x128xf32>
    %17 = arith.mulf %15, %16 : vector<8x128xf32>
    %18 = vector.broadcast %2 : vector<1x128xf32> to vector<8x128xf32>
    %19 = arith.addf %17, %18 : vector<8x128xf32>
    %c0_10 = arith.constant 0 : index
    %c0_11 = arith.constant 0 : index
    %20 = vector.load %arg2[%c0_10, %c0_11] : memref<8x128xf32, #tpu.memory_space<vmem>>, vector<8x128xf32>
    %cst_12 = arith.constant dense<0.000000e+00> : vector<8x128xf32>
    %21 = tpu.matmul %20, %0, %cst_12 {dimension_numbers = #tpu.dot_dimension_numbers<[1], [0], [0], [1], [0, 0, 1, 1], [], []>} : vector<8x128xf32>, vector<128x128xf32>, vector<8x128xf32> -> vector<8x128xf32>
    %22 = arith.mulf %20, %20 : vector<8x128xf32>
    %cst_13 = arith.constant dense<0.000000e+00> : vector<8x128xf32>
    %23 = tpu.matmul %22, %0, %cst_13 {dimension_numbers = #tpu.dot_dimension_numbers<[1], [0], [0], [1], [0, 0, 1, 1], [], []>} : vector<8x128xf32>, vector<128x128xf32>, vector<8x128xf32> -> vector<8x128xf32>
    %24 = arith.mulf %21, %21 : vector<8x128xf32>
    %25 = arith.subf %23, %24 : vector<8x128xf32>
    %cst_14 = arith.constant 0.000000e+00 : f32
    %26 = vector.broadcast %cst_14 : f32 to vector<8x128xf32>
    %27 = arith.maximumf %25, %26 : vector<8x128xf32>
    %cst_15 = arith.constant 9.99999974E-6 : f32
    %28 = vector.broadcast %cst_15 : f32 to vector<8x128xf32>
    %29 = arith.addf %27, %28 : vector<8x128xf32>
    %30 = math.rsqrt %29 : vector<8x128xf32>
    %31 = arith.subf %20, %21 : vector<8x128xf32>
    %32 = arith.mulf %31, %30 : vector<8x128xf32>
    %33 = vector.broadcast %1 : vector<1x128xf32> to vector<8x128xf32>
    %34 = arith.mulf %32, %33 : vector<8x128xf32>
    %35 = vector.broadcast %2 : vector<1x128xf32> to vector<8x128xf32>
    %36 = arith.addf %34, %35 : vector<8x128xf32>
    %37 = arith.addf %19, %36 : vector<8x128xf32>
    %c0_16 = arith.constant 0 : index
    %c0_17 = arith.constant 0 : index
    %38 = vector.load %arg6[%c0_16, %c0_17] : memref<8x128xf32, #tpu.memory_space<vmem>>, vector<8x128xf32>
    tpu.vector_store %arg6[%c0_16, %c0_17], %37 {strides = array<i32>} : memref<8x128xf32, #tpu.memory_space<vmem>>, vector<8x128xf32>,
    return
  }
  func.func @transform_0(%arg0: i32) -> (i32, i32) {
    %c0_i32 = arith.constant 0 : i32
    %c0_i32_0 = arith.constant 0 : i32
    return %arg0, %c0_i32 : i32, i32
  }
  func.func @transform_1(%arg0: i32) -> (i32, i32) {
    %c0_i32 = arith.constant 0 : i32
    %c0_i32_0 = arith.constant 0 : i32
    return %arg0, %c0_i32 : i32, i32
  }
  func.func @transform_2(%arg0: i32) -> (i32, i32) {
    %c0_i32 = arith.constant 0 : i32
    %c0_i32_0 = arith.constant 0 : i32
    %c0_i32_1 = arith.constant 0 : i32
    return %c0_i32, %c0_i32_0 : i32, i32
  }
  func.func @transform_3(%arg0: i32) -> (i32, i32) {
    %c0_i32 = arith.constant 0 : i32
    %c0_i32_0 = arith.constant 0 : i32
    %c0_i32_1 = arith.constant 0 : i32
    return %c0_i32, %c0_i32_0 : i32, i32
  }
  func.func @transform_4(%arg0: i32) -> (i32, i32) {
    %c0_i32 = arith.constant 0 : i32
    %c0_i32_0 = arith.constant 0 : i32
    %c0_i32_1 = arith.constant 0 : i32
    return %c0_i32, %c0_i32_0 : i32, i32
  }
  func.func @transform_5(%arg0: i32) -> (i32, i32) {
    %c0_i32 = arith.constant 0 : i32
    %c0_i32_0 = arith.constant 0 : i32
    return %arg0, %c0_i32 : i32, i32
  }
}

</mosaic_0001>

<llo_original>
// kernel: tpu_custom_call.1
$region0: #{tpu_custom_call.1}
  #allocation0 [shape = 'u32[]', space=smem, size = 0x4, offset = 0x4, fixed_abs, tag = 'smem constant byte address 0x4 - core index']
  #allocation1 [shape = 'u32[144,128]{1,0:T(1,128)}', space=vmem, size = 0x12000, scoped, tag = 'internal scratch']
  %s0 = inlined_call_operand.hbm [shape: f32[4,128], index: 0, kind: input, shape index: {}]
  %s1 = inlined_call_operand.hbm [shape: f32[4,128], index: 1, kind: input, shape index: {}]
  %s2 = inlined_call_operand.vmem [shape: f32[1,128], index: 2, kind: input, shape index: {}]
  %s3 = inlined_call_operand.vmem [shape: f32[1,128], index: 3, kind: input, shape index: {}]
  %s4 = inlined_call_operand.hbm [shape: f32[128,128], index: 4, kind: input, shape index: {}]
  %s5 = inlined_call_operand.hbm [shape: f32[4,128], index: 5, kind: output, shape index: {}]
  %s6 = sld [smem:[#allocation0]]
  $region42: #{tpu_custom_call.1} parent=0
    _
  %s8 = ssub.s32 1, %s6
  %s9 = scalar_select 0, %s8, %s6
  $region1: #{tpu_custom_call.1} parent=0
    #allocation2 [shape = 'u8[4096]{0}', space=vmem, size = 0x1000, scoped, tag = 'input window, operand 0, single buffered']
    #allocation3 [shape = 's32[1]{0}', space=sflag, size = 0x4, scoped, tag = 'scoped memory for tpu_custom_call.1']
    #allocation4 [shape = 's32[1]{0}', space=sflag, size = 0x4, scoped, tag = 'scoped memory for tpu_custom_call.1']
    #allocation5 [shape = 'u8[4096]{0}', space=vmem, size = 0x1000, scoped, tag = 'input window, operand 1, single buffered']
    #allocation6 [shape = 's32[1]{0}', space=sflag, size = 0x4, scoped, tag = 'scoped memory for tpu_custom_call.1']
    #allocation7 [shape = 'u8[65536]{0}', space=vmem, size = 0x10000, scoped, tag = 'input window, operand 4, single buffered']
    #allocation8 [shape = 'u8[4096]{0}', space=vmem, size = 0x1000, scoped, tag = 'output window, operand 0, single buffered']
    %10 = vsyncpa [#allocation3], 0
    %11 = vsyncpa [#allocation6], 0
    %12 = vsyncpa [#allocation4], 0
    // Predicated region
    $region2: #{tpu_custom_call.1} parent=1 // pred_check
      _
    $region3: #{tpu_custom_call.1} parent=1 // pred_check_branch
      %14 = sbr.rel (0) target = $region5
    $region4: #{tpu_custom_call.1} parent=1 // pred_region
      %s16 = ssub.s32 128, 64
      %17 = vsyncadd [#allocation3], %s16
      %s18 = sshll.u32 [#allocation2], 4
      %s19 = int_to_ptr.vmem [resolvable:$true] %s18
      %24 = dma.hbm_to_vmem [thread:$0]  %s0, 64, %s19, [#allocation3], 64, 64, 4
    $region5: #{tpu_custom_call.1} parent=1 // pred_fallthru
      _
    // Predicated region
    $region6: #{tpu_custom_call.1} parent=1 // pred_check
      _
    $region7: #{tpu_custom_call.1} parent=1 // pred_check_branch
      %26 = sbr.rel (0) target = $region9
    $region8: #{tpu_custom_call.1} parent=1 // pred_region
      %s28 = ssub.s32 128, 64
      %29 = vsyncadd [#allocation6], %s28
      %s30 = sshll.u32 [#allocation5], 4
      %s31 = int_to_ptr.vmem [resolvable:$true] %s30
      %36 = dma.hbm_to_vmem [thread:$0]  %s1, 64, %s31, [#allocation6], 64, 64, 4
    $region9: #{tpu_custom_call.1} parent=1 // pred_fallthru
      _
    // Predicated region
    $region10: #{tpu_custom_call.1} parent=1 // pred_check
      _
    $region11: #{tpu_custom_call.1} parent=1 // pred_check_branch
      %38 = sbr.rel (0) target = $region13
    $region12: #{tpu_custom_call.1} parent=1 // pred_region
      _
    $region13: #{tpu_custom_call.1} parent=1 // pred_fallthru
      _
    // Predicated region
    $region14: #{tpu_custom_call.1} parent=1 // pred_check
      _
    $region15: #{tpu_custom_call.1} parent=1 // pred_check_branch
      %40 = sbr.rel (0) target = $region17
    $region16: #{tpu_custom_call.1} parent=1 // pred_region
      _
    $region17: #{tpu_custom_call.1} parent=1 // pred_fallthru
      _
    // Predicated region
    $region18: #{tpu_custom_call.1} parent=1 // pred_check
      _
    $region19: #{tpu_custom_call.1} parent=1 // pred_check_branch
      %42 = sbr.rel (0) target = $region21
    $region20: #{tpu_custom_call.1} parent=1 // pred_region
      %s44 = ssub.s32 2048, 2048
      %45 = vsyncadd [#allocation6], %s44
      %s46 = sshll.u32 [#allocation7], 4
      %s47 = int_to_ptr.vmem [resolvable:$true] %s46
      %52 = dma.hbm_to_vmem [thread:$0]  %s4, 2048, %s47, [#allocation6], 128, 128, 8
    $region21: #{tpu_custom_call.1} parent=1 // pred_fallthru
      _
    // Predicated region
    $region22: #{tpu_custom_call.1} parent=1 // pred_check
      _
    $region23: #{tpu_custom_call.1} parent=1 // pred_check_branch
      %54 = sbr.rel (0) target = $region25
    $region24: #{tpu_custom_call.1} parent=1 // pred_region
      %55 = dma.done [#allocation3], 128
    $region25: #{tpu_custom_call.1} parent=1 // pred_fallthru
      _
    // Predicated region
    $region26: #{tpu_custom_call.1} parent=1 // pred_check
      _
    $region27: #{tpu_custom_call.1} parent=1 // pred_check_branch
      %57 = sbr.rel (0) target = $region29
    $region28: #{tpu_custom_call.1} parent=1 // pred_region
      %58 = dma.done [#allocation6], 128
    $region29: #{tpu_custom_call.1} parent=1 // pred_fallthru
      _
    // Predicated region
    $region30: #{tpu_custom_call.1} parent=1 // pred_check
      _
    $region31: #{tpu_custom_call.1} parent=1 // pred_check_branch
      %60 = sbr.rel (0) target = $region33
    $region32: #{tpu_custom_call.1} parent=1 // pred_region
      %61 = dma.done [#allocation6], 2048
    $region33: #{tpu_custom_call.1} parent=1 // pred_fallthru
      _
    %v62 = vld [vmem:[#allocation7] sm:$0xff]
    %v63 = vld [vmem:[#allocation7 + $0x8] sm:$0xff]
    %v64 = vld [vmem:[#allocation7 + $0x10] sm:$0xff]
    %v65 = vld [vmem:[#allocation7 + $0x18] sm:$0xff]
    %v66 = vld [vmem:[#allocation7 + $0x20] sm:$0xff]
    %v67 = vld [vmem:[#allocation7 + $0x28] sm:$0xff]
    %v68 = vld [vmem:[#allocation7 + $0x30] sm:$0xff]
    %v69 = vld [vmem:[#allocation7 + $0x38] sm:$0xff]
    %v70 = vld [vmem:[#allocation7 + $0x40] sm:$0xff]
    %v71 = vld [vmem:[#allocation7 + $0x48] sm:$0xff]
    %v72 = vld [vmem:[#allocation7 + $0x50] sm:$0xff]
    %v73 = vld [vmem:[#allocation7 + $0x58] sm:$0xff]
    %v74 = vld [vmem:[#allocation7 + $0x60] sm:$0xff]
    %v75 = vld [vmem:[#allocation7 + $0x68] sm:$0xff]
    %v76 = vld [vmem:[#allocation7 + $0x70] sm:$0xff]
    %v77 = vld [vmem:[#allocation7 + $0x78] sm:$0xff]
    %v78 = vld [vmem:[%s2] sm:$0x1]
    %v79 = vld [vmem:[%s3] sm:$0x1]
    %v80 = vld [vmem:[#allocation2] sm:$0xff]
    %81 = vmatprep.subr.mxu0 0.0
    %82 = vmatpush1.msra.mxu0 %v62
    %83 = vmatprep.subr.mxu0 0.0
    %84 = vmatpush1.msra.mxu0 %v63
    %85 = vmatprep.subr.mxu0 0.0
    %86 = vmatpush1.msra.mxu0 %v64
    %87 = vmatprep.subr.mxu0 0.0
    %88 = vmatpush1.msra.mxu0 %v65
    %89 = vmatprep.subr.mxu0 0.0
    %90 = vmatpush1.msra.mxu0 %v66
    %91 = vmatprep.subr.mxu0 0.0
    %92 = vmatpush1.msra.mxu0 %v67
    %93 = vmatprep.subr.mxu0 0.0
    %94 = vmatpush1.msra.mxu0 %v68
    %95 = vmatprep.subr.mxu0 0.0
    %96 = vmatpush1.msra.mxu0 %v69
    %97 = vmatprep.subr.mxu0 0.0
    %98 = vmatpush1.msra.mxu0 %v70
    %99 = vmatprep.subr.mxu0 0.0
    %100 = vmatpush1.msra.mxu0 %v71
    %101 = vmatprep.subr.mxu0 0.0
    %102 = vmatpush1.msra.mxu0 %v72
    %103 = vmatprep.subr.mxu0 0.0
    %104 = vmatpush1.msra.mxu0 %v73
    %105 = vmatprep.subr.mxu0 0.0
    %106 = vmatpush1.msra.mxu0 %v74
    %107 = vmatprep.subr.mxu0 0.0
    %108 = vmatpush1.msra.mxu0 %v75
    %109 = vmatprep.subr.mxu0 0.0
    %110 = vmatpush1.msra.mxu0 %v76
    %111 = vmatprep.subr.mxu0 0.0
    %112 = vmatpush1.msra.mxu0 %v77
    %113 = vmatprep.subr.mxu0 0.0
    %114 = vmatpush1.msra.mxu0 0.0
    %115 = vmatprep.subr.mxu0 0.0
    %116 = vmatpush1.msra.mxu0 0.0
    %117 = vmatprep.subr.mxu0 0.0
    %118 = vmatpush1.msra.mxu0 0.0
    %119 = vmatprep.subr.mxu0 0.0
    %120 = vmatpush1.msra.mxu0 0.0
    %121 = vmatprep.subr.mxu0 0.0
    %122 = vmatpush1.msra.mxu0 0.0
    %123 = vmatprep.subr.mxu0 0.0
    %124 = vmatpush1.msra.mxu0 0.0
    %125 = vmatprep.subr.mxu0 0.0
    %126 = vmatpush1.msra.mxu0 0.0
    %127 = vmatprep.subr.mxu0 0.0
    %128 = vmatpush1.msra.mxu0 0.0
    %129 = vmatprep.subr.mxu0 0.0
    %130 = vmatpush1.msra.mxu0 0.0
    %131 = vmatprep.subr.mxu0 0.0
    %132 = vmatpush1.msra.mxu0 0.0
    %133 = vmatprep.subr.mxu0 0.0
    %134 = vmatpush1.msra.mxu0 0.0
    %135 = vmatprep.subr.mxu0 0.0
    %136 = vmatpush1.msra.mxu0 0.0
    %137 = vmatprep.subr.mxu0 0.0
    %138 = vmatpush1.msra.mxu0 0.0
    %139 = vmatprep.subr.mxu0 0.0
    %140 = vmatpush1.msra.mxu0 0.0
    %141 = vmatprep.subr.mxu0 0.0
    %142 = vmatpush1.msra.mxu0 0.0
    %143 = vmatprep.subr.mxu0 0.0
    %144 = vmatpush1.msra.mxu0 0.0
    %145 = vmatprep.mubr.f32.mxu0 0.0
    %146 = vmatmul.mubr.f32.gmra.mrb[0].mxu0 %v80
    %v147 = vpop.f32.mrb[0].mxu0
    %v148 = vadd.f32 0.0, %v147
    %v149 = vpop.f32.mrb[0].mxu0
    %150 = vdwg.mxu0
    %v151 = vmul.f32 %v80, %v80
    %152 = vmatprep.subr.mxu0 0.0
    %153 = vmatpush1.msra.mxu0 %v62
    %154 = vmatprep.subr.mxu0 0.0
    %155 = vmatpush1.msra.mxu0 %v63
    %156 = vmatprep.subr.mxu0 0.0
    %157 = vmatpush1.msra.mxu0 %v64
    %158 = vmatprep.subr.mxu0 0.0
    %159 = vmatpush1.msra.mxu0 %v65
    %160 = vmatprep.subr.mxu0 0.0
    %161 = vmatpush1.msra.mxu0 %v66
    %162 = vmatprep.subr.mxu0 0.0
    %163 = vmatpush1.msra.mxu0 %v67
    %164 = vmatprep.subr.mxu0 0.0
    %165 = vmatpush1.msra.mxu0 %v68
    %166 = vmatprep.subr.mxu0 0.0
    %167 = vmatpush1.msra.mxu0 %v69
    %168 = vmatprep.subr.mxu0 0.0
    %169 = vmatpush1.msra.mxu0 %v70
    %170 = vmatprep.subr.mxu0 0.0
    %171 = vmatpush1.msra.mxu0 %v71
    %172 = vmatprep.subr.mxu0 0.0
    %173 = vmatpush1.msra.mxu0 %v72
    %174 = vmatprep.subr.mxu0 0.0
    %175 = vmatpush1.msra.mxu0 %v73
    %176 = vmatprep.subr.mxu0 0.0
    %177 = vmatpush1.msra.mxu0 %v74
    %178 = vmatprep.subr.mxu0 0.0
    %179 = vmatpush1.msra.mxu0 %v75
    %180 = vmatprep.subr.mxu0 0.0
    %181 = vmatpush1.msra.mxu0 %v76
    %182 = vmatprep.subr.mxu0 0.0
    %183 = vmatpush1.msra.mxu0 %v77
    %184 = vmatprep.subr.mxu0 0.0
    %185 = vmatpush1.msra.mxu0 0.0
    %186 = vmatprep.subr.mxu0 0.0
    %187 = vmatpush1.msra.mxu0 0.0
    %188 = vmatprep.subr.mxu0 0.0
    %189 = vmatpush1.msra.mxu0 0.0
    %190 = vmatprep.subr.mxu0 0.0
    %191 = vmatpush1.msra.mxu0 0.0
    %192 = vmatprep.subr.mxu0 0.0
    %193 = vmatpush1.msra.mxu0 0.0
    %194 = vmatprep.subr.mxu0 0.0
    %195 = vmatpush1.msra.mxu0 0.0
    %196 = vmatprep.subr.mxu0 0.0
    %197 = vmatpush1.msra.mxu0 0.0
    %198 = vmatprep.subr.mxu0 0.0
    %199 = vmatpush1.msra.mxu0 0.0
    %200 = vmatprep.subr.mxu0 0.0
    %201 = vmatpush1.msra.mxu0 0.0
    %202 = vmatprep.subr.mxu0 0.0
    %203 = vmatpush1.msra.mxu0 0.0
    %204 = vmatprep.subr.mxu0 0.0
    %205 = vmatpush1.msra.mxu0 0.0
    %206 = vmatprep.subr.mxu0 0.0
    %207 = vmatpush1.msra.mxu0 0.0
    %208 = vmatprep.subr.mxu0 0.0
    %209 = vmatpush1.msra.mxu0 0.0
    %210 = vmatprep.subr.mxu0 0.0
    %211 = vmatpush1.msra.mxu0 0.0
    %212 = vmatprep.subr.mxu0 0.0
    %213 = vmatpush1.msra.mxu0 0.0
    %214 = vmatprep.subr.mxu0 0.0
    %215 = vmatpush1.msra.mxu0 0.0
    %216 = vmatprep.mubr.f32.mxu0 0.0
    %217 = vmatmul.mubr.f32.gmra.mrb[0].mxu0 %v151
    %v218 = vpop.f32.mrb[0].mxu0
    %v219 = vadd.f32 0.0, %v218
    %v220 = vpop.f32.mrb[0].mxu0
    %221 = vdwg.mxu0
    %v222 = vmul.f32 %v148, %v148
    %v223 = vsub.f32 %v219, %v222
    %v224 = vmax.f32 %v223, 0.0
    %v225 = vadd.f32 %v224, 1e-05
    %v226 = vrsqrt.pop %v225
    %v227 = vsub.f32 %v80, %v148
    %v228 = vmul.f32 %v227, %v226
    %v230 = vlaneseq
    %v231 = vshrl.u32 %v230, 7
    %v232 = vsub.s32 0, %v231
    %v233 = vrot.slane %v78, %v232
    %v235 = vmul.f32 %v228, %v233
    %v237 = vlaneseq
    %v238 = vshrl.u32 %v237, 7
    %v239 = vsub.s32 0, %v238
    %v240 = vrot.slane %v79, %v239
    %v242 = vadd.f32 %v235, %v240
    %v243 = vld [vmem:[#allocation5] sm:$0xff]
    %244 = vmatprep.subr.mxu0 0.0
    %245 = vmatpush1.msra.mxu0 %v62
    %246 = vmatprep.subr.mxu0 0.0
    %247 = vmatpush1.msra.mxu0 %v63
    %248 = vmatprep.subr.mxu0 0.0
    %249 = vmatpush1.msra.mxu0 %v64
    %250 = vmatprep.subr.mxu0 0.0
    %251 = vmatpush1.msra.mxu0 %v65
    %252 = vmatprep.subr.mxu0 0.0
    %253 = vmatpush1.msra.mxu0 %v66
    %254 = vmatprep.subr.mxu0 0.0
    %255 = vmatpush1.msra.mxu0 %v67
    %256 = vmatprep.subr.mxu0 0.0
    %257 = vmatpush1.msra.mxu0 %v68
    %258 = vmatprep.subr.mxu0 0.0
    %259 = vmatpush1.msra.mxu0 %v69
    %260 = vmatprep.subr.mxu0 0.0
    %261 = vmatpush1.msra.mxu0 %v70
    %262 = vmatprep.subr.mxu0 0.0
    %263 = vmatpush1.msra.mxu0 %v71
    %264 = vmatprep.subr.mxu0 0.0
    %265 = vmatpush1.msra.mxu0 %v72
    %266 = vmatprep.subr.mxu0 0.0
    %267 = vmatpush1.msra.mxu0 %v73
    %268 = vmatprep.subr.mxu0 0.0
    %269 = vmatpush1.msra.mxu0 %v74
    %270 = vmatprep.subr.mxu0 0.0
    %271 = vmatpush1.msra.mxu0 %v75
    %272 = vmatprep.subr.mxu0 0.0
    %273 = vmatpush1.msra.mxu0 %v76
    %274 = vmatprep.subr.mxu0 0.0
    %275 = vmatpush1.msra.mxu0 %v77
    %276 = vmatprep.subr.mxu0 0.0
    %277 = vmatpush1.msra.mxu0 0.0
    %278 = vmatprep.subr.mxu0 0.0
    %279 = vmatpush1.msra.mxu0 0.0
    %280 = vmatprep.subr.mxu0 0.0
    %281 = vmatpush1.msra.mxu0 0.0
    %282 = vmatprep.subr.mxu0 0.0
    %283 = vmatpush1.msra.mxu0 0.0
    %284 = vmatprep.subr.mxu0 0.0
    %285 = vmatpush1.msra.mxu0 0.0
    %286 = vmatprep.subr.mxu0 0.0
    %287 = vmatpush1.msra.mxu0 0.0
    %288 = vmatprep.subr.mxu0 0.0
    %289 = vmatpush1.msra.mxu0 0.0
    %290 = vmatprep.subr.mxu0 0.0
    %291 = vmatpush1.msra.mxu0 0.0
    %292 = vmatprep.subr.mxu0 0.0
    %293 = vmatpush1.msra.mxu0 0.0
    %294 = vmatprep.subr.mxu0 0.0
    %295 = vmatpush1.msra.mxu0 0.0
    %296 = vmatprep.subr.mxu0 0.0
    %297 = vmatpush1.msra.mxu0 0.0
    %298 = vmatprep.subr.mxu0 0.0
    %299 = vmatpush1.msra.mxu0 0.0
    %300 = vmatprep.subr.mxu0 0.0
    %301 = vmatpush1.msra.mxu0 0.0
    %302 = vmatprep.subr.mxu0 0.0
    %303 = vmatpush1.msra.mxu0 0.0
    %304 = vmatprep.subr.mxu0 0.0
    %305 = vmatpush1.msra.mxu0 0.0
    %306 = vmatprep.subr.mxu0 0.0
    %307 = vmatpush1.msra.mxu0 0.0
    %308 = vmatprep.mubr.f32.mxu0 0.0
    %309 = vmatmul.mubr.f32.gmra.mrb[0].mxu0 %v243
    %v310 = vpop.f32.mrb[0].mxu0
    %v311 = vadd.f32 0.0, %v310
    %v312 = vpop.f32.mrb[0].mxu0
    %313 = vdwg.mxu0
    %v314 = vmul.f32 %v243, %v243
    %315 = vmatprep.subr.mxu0 0.0
    %316 = vmatpush1.msra.mxu0 %v62
    %317 = vmatprep.subr.mxu0 0.0
    %318 = vmatpush1.msra.mxu0 %v63
    %319 = vmatprep.subr.mxu0 0.0
    %320 = vmatpush1.msra.mxu0 %v64
    %321 = vmatprep.subr.mxu0 0.0
    %322 = vmatpush1.msra.mxu0 %v65
    %323 = vmatprep.subr.mxu0 0.0
    %324 = vmatpush1.msra.mxu0 %v66
    %325 = vmatprep.subr.mxu0 0.0
    %326 = vmatpush1.msra.mxu0 %v67
    %327 = vmatprep.subr.mxu0 0.0
    %328 = vmatpush1.msra.mxu0 %v68
    %329 = vmatprep.subr.mxu0 0.0
    %330 = vmatpush1.msra.mxu0 %v69
    %331 = vmatprep.subr.mxu0 0.0
    %332 = vmatpush1.msra.mxu0 %v70
    %333 = vmatprep.subr.mxu0 0.0
    %334 = vmatpush1.msra.mxu0 %v71
    %335 = vmatprep.subr.mxu0 0.0
    %336 = vmatpush1.msra.mxu0 %v72
    %337 = vmatprep.subr.mxu0 0.0
    %338 = vmatpush1.msra.mxu0 %v73
    %339 = vmatprep.subr.mxu0 0.0
    %340 = vmatpush1.msra.mxu0 %v74
    %341 = vmatprep.subr.mxu0 0.0
    %342 = vmatpush1.msra.mxu0 %v75
    %343 = vmatprep.subr.mxu0 0.0
    %344 = vmatpush1.msra.mxu0 %v76
    %345 = vmatprep.subr.mxu0 0.0
    %346 = vmatpush1.msra.mxu0 %v77
    %347 = vmatprep.subr.mxu0 0.0
    %348 = vmatpush1.msra.mxu0 0.0
    %349 = vmatprep.subr.mxu0 0.0
    %350 = vmatpush1.msra.mxu0 0.0
    %351 = vmatprep.subr.mxu0 0.0
    %352 = vmatpush1.msra.mxu0 0.0
    %353 = vmatprep.subr.mxu0 0.0
    %354 = vmatpush1.msra.mxu0 0.0
    %355 = vmatprep.subr.mxu0 0.0
    %356 = vmatpush1.msra.mxu0 0.0
    %357 = vmatprep.subr.mxu0 0.0
    %358 = vmatpush1.msra.mxu0 0.0
    %359 = vmatprep.subr.mxu0 0.0
    %360 = vmatpush1.msra.mxu0 0.0
    %361 = vmatprep.subr.mxu0 0.0
    %362 = vmatpush1.msra.mxu0 0.0
    %363 = vmatprep.subr.mxu0 0.0
    %364 = vmatpush1.msra.mxu0 0.0
    %365 = vmatprep.subr.mxu0 0.0
    %366 = vmatpush1.msra.mxu0 0.0
    %367 = vmatprep.subr.mxu0 0.0
    %368 = vmatpush1.msra.mxu0 0.0
    %369 = vmatprep.subr.mxu0 0.0
    %370 = vmatpush1.msra.mxu0 0.0
    %371 = vmatprep.subr.mxu0 0.0
    %372 = vmatpush1.msra.mxu0 0.0
    %373 = vmatprep.subr.mxu0 0.0
    %374 = vmatpush1.msra.mxu0 0.0
    %375 = vmatprep.subr.mxu0 0.0
    %376 = vmatpush1.msra.mxu0 0.0
    %377 = vmatprep.subr.mxu0 0.0
    %378 = vmatpush1.msra.mxu0 0.0
    %379 = vmatprep.mubr.f32.mxu0 0.0
    %380 = vmatmul.mubr.f32.gmra.mrb[0].mxu0 %v314
    %v381 = vpop.f32.mrb[0].mxu0
    %v382 = vadd.f32 0.0, %v381
    %v383 = vpop.f32.mrb[0].mxu0
    %384 = vdwg.mxu0
    %v385 = vmul.f32 %v311, %v311
    %v386 = vsub.f32 %v382, %v385
    %v387 = vmax.f32 %v386, 0.0
    %v388 = vadd.f32 %v387, 1e-05
    %v389 = vrsqrt.pop %v388
    %v390 = vsub.f32 %v243, %v311
    %v391 = vmul.f32 %v390, %v389
    %v392 = vmul.f32 %v391, %v233
    %v393 = vadd.f32 %v392, %v240
    %v394 = vadd.f32 %v242, %v393
    %395 = vst [vmem:[#allocation8] sm:$0xff] %v394
    // Predicated region
    $region34: #{tpu_custom_call.1} parent=1 // pred_check
      _
    $region35: #{tpu_custom_call.1} parent=1 // pred_check_branch
      %397 = sbr.rel (0) target = $region37
    $region36: #{tpu_custom_call.1} parent=1 // pred_region
      %s399 = ssub.s32 128, 64
      %400 = vsyncadd [#allocation4], %s399
      %s401 = sshll.u32 [#allocation8], 4
      %s402 = int_to_ptr.vmem [resolvable:$true] %s401
      %407 = dma.vmem_to_hbm [thread:$0]  %s402, 64, %s5, [#allocation4], 64, 64, 4
    $region37: #{tpu_custom_call.1} parent=1 // pred_fallthru
      _
    // Predicated region
    $region38: #{tpu_custom_call.1} parent=1 // pred_check
      _
    $region39: #{tpu_custom_call.1} parent=1 // pred_check_branch
      %409 = sbr.rel (0) target = $region41
    $region40: #{tpu_custom_call.1} parent=1 // pred_region
      %410 = dma.done [#allocation4], 128
    $region41: #{tpu_custom_call.1} parent=1 // pred_fallthru
      _
    %411 = vsyncpa [#allocation3], 1
    %412 = vsyncpa [#allocation6], 1
    %413 = vsyncpa [#allocation4], 1

</llo_original>
